<compile_context>
chip_gen: v5e
topology: v5e:2x2
jax: 0.10.0
libtpu: 0.0.40
codegen_flags: <defaults>
</compile_context>

<pallas_src>
import jax
import jax.numpy as jnp
from jax.experimental import pallas as pl
from jax.experimental.pallas import tpu as pltpu


def _to_colour_kernel(x_ref, o_ref):
    """x_ref: (1, C, TH, TW) input tile (NCHW order).
       o_ref: (1, TW, TH*3*C) output tile (lane-dense minor dim)."""
    _, C, TH, TW = x_ref.shape

    # One load of the whole tile + one VPU scale.  Lane dim = TW throughout.
    g = x_ref[0] * 255.0                                   # (C, TH, TW)

    # Channel interleave (c, h) -> (h, c): C is small for ToColour (1-4), so
    # this is a handful of contiguous leading-dim slices stacked along the
    # sublane axis -- cheap vreg copies, not a per-row gather.
    p = jnp.stack([g[c] for c in range(C)], axis=1)        # (TH, C, TW)

    # 3x channel repeat BEFORE the transpose, along the row/sublane axis, so
    # the replication is plain copies and no lane-padded intermediate exists.
    q = jnp.concatenate([p, p, p], axis=1)                 # (TH, 3*C, TW) rows (h, r, c)
    q = q.reshape(TH * 3 * C, TW)

    # Single fused lanes<->sublanes transpose, then one full-width store.
    o_ref[0] = q.T.astype(o_ref.dtype)                     # (TW, TH*3*C)


def _round_up(v, m):
    return -(-v // m) * m


def _vmem_params():
    """(tile budget, vmem_limit_bytes), generation aware."""
    cap = None
    try:
        cap = getattr(pltpu.get_tpu_info(), "vmem_capacity_bytes", None)
    except Exception:
        cap = None
    if cap is None or cap <= 64 * 2**20:
        # v7x-class (64 MiB physical) or unknown: stay conservative.
        return 20 * 2**20, 44 * 2**20
    # v5e / v6e: 128 MiB physical VMEM -> afford bigger tiles.
    return 40 * 2**20, 96 * 2**20


def _fits(th, tw, C, itemsize, sub, budget):
    """Double-buffered BlockSpec buffers + in-kernel temporaries <= budget."""
    lane = 128
    thp, twp = _round_up(th, sub), _round_up(tw, lane)
    in_blk = C * thp * twp * itemsize
    out_blk = _round_up(tw, sub) * _round_up(th * 3 * C, lane) * itemsize
    tmp = (in_blk                                          # g
           + th * _round_up(C, sub) * twp * itemsize       # p  (TH, C, TW)
           + th * _round_up(3 * C, sub) * twp * itemsize   # q  (TH, 3C, TW)
           + out_blk                                       # q reshaped (TH*3C, TW)
           + out_blk)                                      # q.T
    return 2 * (in_blk + out_blk) + tmp <= budget


def _choose_tiles(B, C, H, W, itemsize, budget):
    """Pick (th, tw): legal, fits VMEM, minimizes est. time on 2 TensorCores."""
    sub = {4: 8, 2: 16, 1: 32}.get(itemsize, 8)            # dtype-aware sublane align
    lane = 128
    th_cands = [d for d in range(1, H + 1) if H % d == 0
                and (d == H or (d % sub == 0 and (d * 3 * C) % lane == 0))]
    tw_cands = [d for d in range(1, W + 1) if W % d == 0
                and (d == W or d % lane == 0)]

    best, best_key = None, None
    for th in th_cands:
        for tw in tw_cands:
            if not _fits(th, tw, C, itemsize, sub, budget):
                continue
            steps = B * (H // th) * (W // tw)
            useful = 4 * C * th * tw * itemsize             # 1x read + 3x write
            est = -(-steps // 2) * (useful / 1.0e12 + 0.35e-6)
            key = (est, -useful)
            if best_key is None or key < best_key:
                best, best_key = (th, tw), key
    if best is None:
        # Correctness first: smallest legal blocks; raised vmem_limit_bytes
        # gives the compiler the best chance even past the soft budget.
        best = (min(th_cands), min(tw_cands))
    return best


def to_colour(x):
    """x: (B, C, H, W) -> (B, W, H, 3*C); equals swapaxes(x,1,-1)*255 tiled 3x."""
    B, C, H, W = x.shape
    budget, vmem_limit = _vmem_params()
    th, tw = _choose_tiles(B, C, H, W, x.dtype.itemsize, budget)
    n_h, n_w = H // th, W // tw

    out = pl.pallas_call(
        _to_colour_kernel,
        # Lane-dense output slab; reshaped to (B, W, H, 3C) for free below.
        out_shape=jax.ShapeDtypeStruct((B, W, H * 3 * C), x.dtype),
        grid_spec=pl.GridSpec(
            grid=(B, n_h, n_w),
            in_specs=[
                # Read straight from NCHW: the C<->W swap is fused in-kernel,
                # no wrapper-side transposed copy in HBM.
                pl.BlockSpec((1, C, th, tw), lambda b, hi, wi: (b, 0, hi, wi)),
            ],
            out_specs=pl.BlockSpec(
                (1, tw, th * 3 * C), lambda b, hi, wi: (b, wi, hi)
            ),
        ),
        compiler_params=pltpu.CompilerParams(
            # All grid axes independent -> shardable across TensorCores (v7x).
            dimension_semantics=("parallel", "parallel", "parallel"),
            vmem_limit_bytes=vmem_limit,
        ),
    )(x)

    # Contiguous, metadata-only split of the trailing dim.
    return out.reshape(B, W, H, 3 * C)


if __name__ == "__main__":
    key = jax.random.PRNGKey(0)
    # Small NCHW input consistent with the module's forward.
    x = jax.random.uniform(key, (2, 4, 16, 16), dtype=jnp.float32)

    y = jax.block_until_ready(to_colour(x))

    # Reference (pure JAX): swapaxes * 255, tiled 3x on the last dim.
    ref = jnp.tile(jnp.swapaxes(x, 1, -1) * 255.0, (1, 1, 1, 3))
    assert y.shape == (2, 16, 16, 12), y.shape
    assert jnp.allclose(y, ref), "mismatch vs reference"

    print("KERNEL_OK")
</pallas_src>

<mosaic_0001>
module attributes {stable_mosaic.version = 11 : i64} {
  func.func @_to_colour_kernel(%arg0: i32, %arg1: i32, %arg2: i32, %arg3: memref<1x4x16x16xf32, #tpu.memory_space<vmem>>, %arg4: memref<1x16x192xf32, #tpu.memory_space<vmem>>) attributes {dimension_semantics = [#tpu.dimension_semantics<parallel>, #tpu.dimension_semantics<parallel>, #tpu.dimension_semantics<parallel>], iteration_bounds = array<i64: 2, 1, 1>, scalar_prefetch = 0 : i64, scratch_operands = 0 : i64, tpu.core_type = #tpu.core_type<tc>, window_params = [{transform_indices = @transform_0, window_bounds = array<i64: 1, 4, 16, 16>}, {transform_indices = @transform_1, window_bounds = array<i64: 1, 16, 192>}]} {
    %c0 = arith.constant 0 : index
    %c0_0 = arith.constant 0 : index
    %c0_1 = arith.constant 0 : index
    %c0_2 = arith.constant 0 : index
    %0 = vector.load %arg3[%c0, %c0_0, %c0_1, %c0_2] : memref<1x4x16x16xf32, #tpu.memory_space<vmem>>, vector<1x4x16x16xf32>
    %1 = vector.shape_cast %0 : vector<1x4x16x16xf32> to vector<4x16x16xf32>
    %cst = arith.constant 2.550000e+02 : f32
    %2 = vector.broadcast %cst : f32 to vector<4x16x16xf32>
    %3 = arith.mulf %1, %2 : vector<4x16x16xf32>
    %4 = vector.extract_strided_slice %3 {offsets = [0, 0, 0], sizes = [1, 16, 16], strides = [1, 1, 1]} : vector<4x16x16xf32> to vector<1x16x16xf32>
    %5 = vector.shape_cast %4 : vector<1x16x16xf32> to vector<16x16xf32>
    %6 = vector.extract_strided_slice %3 {offsets = [1, 0, 0], sizes = [1, 16, 16], strides = [1, 1, 1]} : vector<4x16x16xf32> to vector<1x16x16xf32>
    %7 = vector.shape_cast %6 : vector<1x16x16xf32> to vector<16x16xf32>
    %8 = vector.extract_strided_slice %3 {offsets = [2, 0, 0], sizes = [1, 16, 16], strides = [1, 1, 1]} : vector<4x16x16xf32> to vector<1x16x16xf32>
    %9 = vector.shape_cast %8 : vector<1x16x16xf32> to vector<16x16xf32>
    %10 = vector.extract_strided_slice %3 {offsets = [3, 0, 0], sizes = [1, 16, 16], strides = [1, 1, 1]} : vector<4x16x16xf32> to vector<1x16x16xf32>
    %11 = vector.shape_cast %10 : vector<1x16x16xf32> to vector<16x16xf32>
    %12 = vector.shape_cast %5 : vector<16x16xf32> to vector<16x1x16xf32>
    %13 = vector.shape_cast %7 : vector<16x16xf32> to vector<16x1x16xf32>
    %14 = vector.shape_cast %9 : vector<16x16xf32> to vector<16x1x16xf32>
    %15 = vector.shape_cast %11 : vector<16x16xf32> to vector<16x1x16xf32>
    %16 = tpu.concatenate %12, %13, %14, %15 in 1 : vector<16x1x16xf32>, vector<16x1x16xf32>, vector<16x1x16xf32>, vector<16x1x16xf32> -> vector<16x4x16xf32>
    %17 = tpu.concatenate %16, %16, %16 in 1 : vector<16x4x16xf32>, vector<16x4x16xf32>, vector<16x4x16xf32> -> vector<16x12x16xf32>
    %18 = vector.shape_cast %17 : vector<16x12x16xf32> to vector<192x16xf32>
    %19 = tpu.transpose %18, [1, 0] : vector<192x16xf32> -> vector<16x192xf32>
    %c0_3 = arith.constant 0 : index
    %c0_4 = arith.constant 0 : index
    %c0_5 = arith.constant 0 : index
    %20 = vector.load %arg4[%c0_3, %c0_4, %c0_5] : memref<1x16x192xf32, #tpu.memory_space<vmem>>, vector<1x16x192xf32>
    %21 = vector.shape_cast %20 : vector<1x16x192xf32> to vector<16x192xf32>
    %22 = vector.shape_cast %19 : vector<16x192xf32> to vector<1x16x192xf32>
    tpu.vector_store %arg4[%c0_3, %c0_4, %c0_5], %22 {strides = array<i32>} : memref<1x16x192xf32, #tpu.memory_space<vmem>>, vector<1x16x192xf32>,
    return
  }
  func.func @transform_0(%arg0: i32, %arg1: i32, %arg2: i32) -> (i32, i32, i32, i32) {
    %c0_i32 = arith.constant 0 : i32
    %c0_i32_0 = arith.constant 0 : i32
    return %arg0, %c0_i32, %arg1, %arg2 : i32, i32, i32, i32
  }
  func.func @transform_1(%arg0: i32, %arg1: i32, %arg2: i32) -> (i32, i32, i32) {
    %c0_i32 = arith.constant 0 : i32
    return %arg0, %arg2, %arg1 : i32, i32, i32
  }
}

</mosaic_0001>

<llo_original>
// kernel: tpu_custom_call.1
$region0: #{tpu_custom_call.1}
  #allocation0 [shape = 'u32[]', space=smem, size = 0x4, offset = 0x4, fixed_abs, tag = 'smem constant byte address 0x4 - core index']
  #allocation1 [shape = 'u32[72,128]{1,0:T(1,128)}', space=vmem, size = 0x9000, scoped, tag = 'internal scratch']
  %s0 = inlined_call_operand.hbm [shape: f32[2,4,16,16], index: 0, kind: input, shape index: {}]
  %s1 = inlined_call_operand.hbm [shape: f32[2,16,192], index: 1, kind: output, shape index: {}]
  %s2 = sld [smem:[#allocation0]]
  $region41: #{tpu_custom_call.1} parent=0
    _
  %s4 = ssub.s32 1, %s2
  %s5 = scalar_select 0, %s4, %s2
  $region1: #{tpu_custom_call.1} parent=0
    #allocation2 [shape = 'u8[65536]{0}', space=vmem, size = 0x10000, scoped, tag = 'input window, operand 0']
    #allocation3 [shape = 's32[2]{0}', space=sflag, size = 0x8, scoped, tag = 'scoped memory for tpu_custom_call.1']
    #allocation4 [shape = 's32[2]{0}', space=sflag, size = 0x8, scoped, tag = 'scoped memory for tpu_custom_call.1']
    #allocation5 [shape = 'u8[32768]{0}', space=vmem, size = 0x8000, scoped, tag = 'output window, operand 0']
    %6 = vsyncpa [#allocation3], 0
    %s7 = scalar_lea.sflag [#allocation3], 1
    %8 = vsyncpa %s7, 0
    %9 = vsyncpa [#allocation4], 0
    %s10 = scalar_lea.sflag [#allocation4], 1
    %11 = vsyncpa %s10, 0
    loop: start=0, step=1, limit=4
    $region2: #{tpu_custom_call.1} parent=1 // loop_pre_header
      _
    $region3: #{tpu_custom_call.1} parent=1 // loop_header
      %s13 = sphi 0, %s17
      %p14 = scmp.ge.s32.totalorder %s13, 4
      %s20 = sphi 0, %s39
      %s21 = sphi 0, %s35
      %s22 = sphi 0, %s31
      %s23 = sphi 0, %s20
      %s24 = sphi 0, %s21
      %s25 = sphi 0, %s22
      %s26 = sphi 0, %s23
      %s27 = sphi 0, %s24
      %s28 = sphi 0, %s25
      %s46 = sphi 0, %s48
      %s49 = sphi 0, %s46
      %s50 = sphi 0, %s49
      %s66 = sphi 0, %s50
      %s76 = sphi 0, %s78
      %s79 = sphi 0, %s76
      %s80 = sphi 0, %s79
      %s96 = sphi 0, %s80
    $region4: #{tpu_custom_call.1} parent=1 // loop_header_branch
      %16 = sbr.rel (%p14) target = $region8
    $region5: #{tpu_custom_call.1} parent=1 // loop_body
      %s18 = ssub.s32 %s13, 1
      %s19 = ssub.s32 %s13, 2
      %s29 = sadd.s32 1, %s22
      %p30 = scmp.ge.s32.totalorder %s29, 1
      %s31 = scalar_select %p30, 0, %s29
      %s32 = sadd.s32 1, %s21
      %s33 = scalar_select %p30, %s32, %s21
      %p34 = scmp.ge.s32.totalorder %s33, 1
      %s35 = scalar_select %p34, 0, %s33
      %s36 = sadd.s32 1, %s20
      %s37 = scalar_select %p34, %s36, %s20
      %p38 = scmp.ge.s32.totalorder %s37, 2
      %s39 = scalar_select %p38, 0, %s37
      %s40 = ssub.s32 %s20, %s39
      %s41 = ssub.s32 %s21, %s35
      %s42 = sor.u32 %s40, %s41
      %s43 = ssub.s32 %s22, %s31
      %s44 = sor.u32 %s42, %s43
      %p45 = scmp.eq.s32.totalorder %s44, 0
      %s47 = sadd.s32 %s46, 1
      %s48 = scalar_select %p45, %s46, %s47
      %p51 = pneg %p45
      %p52 = scmp.eq.s32.totalorder %s13, 1
      %p53 = por %p51, %p52
      %p54 = scmp.ne.s32.totalorder %s46, %s49
      %p55 = scmp.eq.s32.totalorder %s13, 0
      %p56 = por %p54, %p55
      %p57 = scmp.ne.s32.totalorder %s46, %s49
      %p58 = scmp.eq.s32.totalorder %s18, 1
      %p59 = por %p57, %p58
      %p60 = scmp.ne.s32.totalorder %s49, %s50
      %p61 = scmp.eq.s32.totalorder %s18, 0
      %p62 = por %p60, %p61
      %p63 = scmp.ne.s32.totalorder %s49, %s50
      %p64 = scmp.eq.s32.totalorder %s19, 1
      %p65 = por %p63, %p64
      %p67 = scmp.ne.s32.totalorder %s50, %s66
      %p68 = scmp.eq.s32.totalorder %s19, 0
      %p69 = por %p67, %p68
      %s70 = ssub.s32 %s20, %s39
      %s71 = ssub.s32 %s22, %s31
      %s72 = sor.u32 %s70, %s71
      %s73 = ssub.s32 %s21, %s35
      %s74 = sor.u32 %s72, %s73
      %p75 = scmp.eq.s32.totalorder %s74, 0
      %s77 = sadd.s32 %s76, 1
      %s78 = scalar_select %p75, %s76, %s77
      %p81 = pneg %p75
      %p82 = scmp.eq.s32.totalorder %s13, 1
      %p83 = por %p81, %p82
      %p84 = scmp.ne.s32.totalorder %s76, %s79
      %p85 = scmp.eq.s32.totalorder %s13, 0
      %p86 = por %p84, %p85
      %p87 = scmp.ne.s32.totalorder %s76, %s79
      %p88 = scmp.eq.s32.totalorder %s18, 1
      %p89 = por %p87, %p88
      %p90 = scmp.ne.s32.totalorder %s79, %s80
      %p91 = scmp.eq.s32.totalorder %s18, 0
      %p92 = por %p90, %p91
      %p93 = scmp.ne.s32.totalorder %s79, %s80
      %p94 = scmp.eq.s32.totalorder %s19, 1
      %p95 = por %p93, %p94
      %p97 = scmp.ne.s32.totalorder %s80, %s96
      %p98 = scmp.eq.s32.totalorder %s19, 0
      %p99 = por %p97, %p98
      %p100 = scmp.le.s32.totalorder 1, %s13
      %p101 = scmp.lt.s32.totalorder %s13, 3
      %p102 = pnand %p100, %p101
      %p103 = pneg %p102
      // Predicated region
      $region9: #{tpu_custom_call.1} parent=5 // pred_check
        _
      $region10: #{tpu_custom_call.1} parent=5 // pred_check_branch
        %105 = sbr.rel (%p102) target = $region12
      $region11: #{tpu_custom_call.1} parent=5 // pred_region
        %s106 = ssub.s32 %s13, 1
      $region12: #{tpu_custom_call.1} parent=5 // pred_fallthru
        _
      %p107 = scmp.lt.s32.totalorder %s13, 2
      // Predicated region
      $region13: #{tpu_custom_call.1} parent=5 // pred_check
        %p108 = pneg %p107
      $region14: #{tpu_custom_call.1} parent=5 // pred_check_branch
        %110 = sbr.rel (%p108) target = $region16
      $region15: #{tpu_custom_call.1} parent=5 // pred_region
        // Predicated region
        $region17: #{tpu_custom_call.1} parent=15 // pred_check
          %p111 = pneg %p56
        $region18: #{tpu_custom_call.1} parent=15 // pred_check_branch
          %113 = sbr.rel (%p111) target = $region20
        $region19: #{tpu_custom_call.1} parent=15 // pred_region
          %s114 = sand.u32 %s46, 1
          %s115 = scalar_lea.sflag [#allocation3], %s114
          %s116 = sand.u32 %s46, 1
          %s117 = smul.addr %s116, 64
          %s118 = scalar_lea.vmem [#allocation2], %s117
          %s119 = smul.u32 2, %s21
          %121 = vsyncadd %s115, 0
          %s122 = sadd.s32 %s22, %s119
          %s123 = smul.addr %s20, 8
          %s124 = sadd.s32 %s122, %s123
          %s125 = smul.addr %s124, 8
          %s126 = scalar_lea.hbm %s0, %s125
          %s127 = sshll.u32 %s126, 4
          %s128 = int_to_ptr.hbm [resolvable:$true] %s127
          %s129 = sshll.u32 %s118, 4
          %s130 = int_to_ptr.vmem [resolvable:$true] %s129
          %135 = dma.hbm_to_vmem [thread:$0]  %s128, 1024, %s130, %s115, 128, 128, 8
        $region20: #{tpu_custom_call.1} parent=15 // pred_fallthru
          _
      $region16: #{tpu_custom_call.1} parent=5 // pred_fallthru
        _
      %p136 = scmp.le.s32.totalorder 1, %s13
      %p137 = scmp.lt.s32.totalorder %s13, 3
      %p138 = pnand %p136, %p137
      %p139 = pneg %p138
      // Predicated region
      $region21: #{tpu_custom_call.1} parent=5 // pred_check
        _
      $region22: #{tpu_custom_call.1} parent=5 // pred_check_branch
        %141 = sbr.rel (%p138) target = $region24
      $region23: #{tpu_custom_call.1} parent=5 // pred_region
        %s142 = ssub.s32 %s13, 1
        %s143 = sand.u32 %s49, 1
        %s144 = scalar_lea.sflag [#allocation3], %s143
        %s145 = sand.u32 %s49, 1
        %s146 = smul.addr %s145, 64
        %s147 = scalar_lea.vmem [#allocation2], %s146
        // Predicated region
        $region25: #{tpu_custom_call.1} parent=23 // pred_check
          %p148 = pneg %p62
        $region26: #{tpu_custom_call.1} parent=23 // pred_check_branch
          %150 = sbr.rel (%p148) target = $region28
        $region27: #{tpu_custom_call.1} parent=23 // pred_region
          %152 = dma.done %s144, 1024
        $region28: #{tpu_custom_call.1} parent=23 // pred_fallthru
          _
        %s153 = sand.u32 %s49, 1
        %s154 = scalar_lea.sflag [#allocation3], %s153
        %s155 = sand.u32 %s49, 1
        %s156 = smul.addr %s155, 64
        %s157 = scalar_lea.vmem [#allocation2], %s156
        %p158 = pneg %p62
        %p159 = pneg %p59
        %p160 = pneg %p92
        %p161 = pneg %p89
        %s162 = sand.u32 %s79, 1
        %s163 = scalar_lea.sflag [#allocation4], %s162
        %s164 = sand.u32 %s79, 1
        %s165 = smul.addr %s164, 32
        %s166 = scalar_lea.vmem [#allocation5], %s165
        %s167 = smul.u32 2, %s24
        %s168 = smul.u32 2, %s25
        %s169 = smul.u32 2, %s24
        %v170 = vld [vmem:[%s147] sm:$0xff]
        %v171 = vld [vmem:[%s147 + $0x8] sm:$0xff]
        %v172 = vld [vmem:[%s147 + $0x10] sm:$0xff]
        %v173 = vld [vmem:[%s147 + $0x18] sm:$0xff]
        %v174 = vld [vmem:[%s147 + $0x20] sm:$0xff]
        %v175 = vld [vmem:[%s147 + $0x28] sm:$0xff]
        %v176 = vld [vmem:[%s147 + $0x30] sm:$0xff]
        %v177 = vld [vmem:[%s147 + $0x38] sm:$0xff]
        %v178 = vmul.f32 %v170, 255.0
        %v179 = vmul.f32 %v171, 255.0
        %v180 = vmul.f32 %v172, 255.0
        %v181 = vmul.f32 %v173, 255.0
        %v182 = vmul.f32 %v174, 255.0
        %v183 = vmul.f32 %v175, 255.0
        %v184 = vmul.f32 %v176, 255.0
        %v185 = vmul.f32 %v177, 255.0
        %v188 = vrot.slane %v178, 1
        %v189 = vrot.slane %v178, 2
        %v190 = vrot.slane %v178, 3
        %v191 = vrot.slane %v178, 4
        %v192 = vrot.slane %v178, 5
        %v193 = vrot.slane %v178, 6
        %v194 = vrot.slane %v178, 7
        %v195 = vrot.slane %v179, 1
        %v196 = vrot.slane %v179, 2
        %v197 = vrot.slane %v179, 3
        %v198 = vrot.slane %v179, 4
        %v199 = vrot.slane %v179, 5
        %v200 = vrot.slane %v179, 6
        %v201 = vrot.slane %v179, 7
        %v218 = vrot.slane %v180, 1
        %v219 = vrot.slane %v180, 2
        %v220 = vrot.slane %v180, 3
        %v221 = vrot.slane %v180, 4
        %v222 = vrot.slane %v180, 5
        %v223 = vrot.slane %v180, 6
        %v224 = vrot.slane %v180, 7
        %v225 = vrot.slane %v181, 1
        %v226 = vrot.slane %v181, 2
        %v227 = vrot.slane %v181, 3
        %v228 = vrot.slane %v181, 4
        %v229 = vrot.slane %v181, 5
        %v230 = vrot.slane %v181, 6
        %v231 = vrot.slane %v181, 7
        %v234 = vrot.slane %v182, 1
        %v235 = vrot.slane %v182, 2
        %v236 = vrot.slane %v182, 3
        %v237 = vrot.slane %v182, 4
        %v238 = vrot.slane %v182, 5
        %v239 = vrot.slane %v182, 6
        %v240 = vrot.slane %v182, 7
        %v241 = vrot.slane %v183, 1
        %v242 = vrot.slane %v183, 2
        %v243 = vrot.slane %v183, 3
        %v244 = vrot.slane %v183, 4
        %v245 = vrot.slane %v183, 5
        %v246 = vrot.slane %v183, 6
        %v247 = vrot.slane %v183, 7
        %v250 = vrot.slane %v184, 1
        %v251 = vrot.slane %v184, 2
        %v252 = vrot.slane %v184, 3
        %v253 = vrot.slane %v184, 4
        %v254 = vrot.slane %v184, 5
        %v255 = vrot.slane %v184, 6
        %v256 = vrot.slane %v184, 7
        %v257 = vrot.slane %v185, 1
        %v258 = vrot.slane %v185, 2
        %v259 = vrot.slane %v185, 3
        %v260 = vrot.slane %v185, 4
        %v261 = vrot.slane %v185, 5
        %v262 = vrot.slane %v185, 6
        %v263 = vrot.slane %v185, 7
        %v264 = vperm.slane %v180, 0
        %v265 = vperm.slane %v218, 0
        %v266 = vperm.slane %v219, 0
        %v267 = vperm.slane %v220, 0
        %v268 = vperm.slane %v221, 0
        %v269 = vperm.slane %v222, 0
        %v270 = vperm.slane %v223, 0
        %v271 = vperm.slane %v224, 0
        %v272 = vperm.slane %v181, 0
        %v273 = vperm.slane %v225, 0
        %v274 = vperm.slane %v226, 0
        %v275 = vperm.slane %v227, 0
        %v276 = vperm.slane %v228, 0
        %v277 = vperm.slane %v229, 0
        %v278 = vperm.slane %v230, 0
        %v279 = vperm.slane %v231, 0
        %v296 = vperm.slane %v182, 0
        %v297 = vperm.slane %v234, 0
        %v298 = vperm.slane %v235, 0
        %v299 = vperm.slane %v236, 0
        %v300 = vperm.slane %v237, 0
        %v301 = vperm.slane %v238, 0
        %v302 = vperm.slane %v239, 0
        %v303 = vperm.slane %v240, 0
        %v304 = vperm.slane %v183, 0
        %v305 = vperm.slane %v241, 0
        %v306 = vperm.slane %v242, 0
        %v307 = vperm.slane %v243, 0
        %v308 = vperm.slane %v244, 0
        %v309 = vperm.slane %v245, 0
        %v310 = vperm.slane %v246, 0
        %v311 = vperm.slane %v247, 0
        %v328 = vperm.slane %v184, 0
        %v329 = vperm.slane %v250, 0
        %v330 = vperm.slane %v251, 0
        %v331 = vperm.slane %v252, 0
        %v332 = vperm.slane %v253, 0
        %v333 = vperm.slane %v254, 0
        %v334 = vperm.slane %v255, 0
        %v335 = vperm.slane %v256, 0
        %v336 = vperm.slane %v185, 0
        %v337 = vperm.slane %v257, 0
        %v338 = vperm.slane %v258, 0
        %v339 = vperm.slane %v259, 0
        %v340 = vperm.slane %v260, 0
        %v341 = vperm.slane %v261, 0
        %v342 = vperm.slane %v262, 0
        %v343 = vperm.slane %v263, 0
        %vm360 = vcmask 1040384
        %v361 = vsel %vm360, %v178, %v264
        %v362 = vsel %vm360, %v188, %v265
        %v363 = vsel %vm360, %v189, %v266
        %v364 = vsel %vm360, %v190, %v267
        %v365 = vsel %vm360, %v191, %v268
        %v366 = vsel %vm360, %v192, %v269
        %v367 = vsel %vm360, %v193, %v270
        %v368 = vsel %vm360, %v194, %v271
        %v369 = vsel %vm360, %v179, %v272
        %v370 = vsel %vm360, %v195, %v273
        %v371 = vsel %vm360, %v196, %v274
        %v372 = vsel %vm360, %v197, %v275
        %v373 = vsel %vm360, %v198, %v276
        %v374 = vsel %vm360, %v199, %v277
        %v375 = vsel %vm360, %v200, %v278
        %v376 = vsel %vm360, %v201, %v279
        %vm377 = vcmask 1041408
        %v378 = vsel %vm377, %v361, %v296
        %v379 = vsel %vm377, %v362, %v297
        %v380 = vsel %vm377, %v363, %v298
        %v381 = vsel %vm377, %v364, %v299
        %v382 = vsel %vm377, %v365, %v300
        %v383 = vsel %vm377, %v366, %v301
        %v384 = vsel %vm377, %v367, %v302
        %v385 = vsel %vm377, %v368, %v303
        %v386 = vsel %vm377, %v369, %v304
        %v387 = vsel %vm377, %v370, %v305
        %v388 = vsel %vm377, %v371, %v306
        %v389 = vsel %vm377, %v372, %v307
        %v390 = vsel %vm377, %v373, %v308
        %v391 = vsel %vm377, %v374, %v309
        %v392 = vsel %vm377, %v375, %v310
        %v393 = vsel %vm377, %v376, %v311
        %vm394 = vcmask 1042432
        %v395 = vsel %vm394, %v378, %v328
        %v396 = vsel %vm394, %v379, %v329
        %v397 = vsel %vm394, %v380, %v330
        %v398 = vsel %vm394, %v381, %v331
        %v399 = vsel %vm394, %v382, %v332
        %v400 = vsel %vm394, %v383, %v333
        %v401 = vsel %vm394, %v384, %v334
        %v402 = vsel %vm394, %v385, %v335
        %v403 = vsel %vm394, %v386, %v336
        %v404 = vsel %vm394, %v387, %v337
        %v405 = vsel %vm394, %v388, %v338
        %v406 = vsel %vm394, %v389, %v339
        %v407 = vsel %vm394, %v390, %v340
        %v408 = vsel %vm394, %v391, %v341
        %v409 = vsel %vm394, %v392, %v342
        %v410 = vsel %vm394, %v393, %v343
        %v427 = vrot.slane %v395, 4
        %v428 = vrot.slane %v396, 4
        %v429 = vrot.slane %v397, 4
        %v430 = vrot.slane %v398, 4
        %v431 = vrot.slane %v399, 4
        %v432 = vrot.slane %v400, 4
        %v433 = vrot.slane %v401, 4
        %v434 = vrot.slane %v402, 4
        %v435 = vrot.slane %v403, 4
        %v436 = vrot.slane %v404, 4
        %v437 = vrot.slane %v405, 4
        %v438 = vrot.slane %v406, 4
        %v439 = vrot.slane %v407, 4
        %v440 = vrot.slane %v408, 4
        %v441 = vrot.slane %v409, 4
        %v442 = vrot.slane %v410, 4
        %vm459 = vcmask 1043456
        %v460 = vsel %vm459, %v395, %v427
        %v461 = vsel %vm459, %v396, %v428
        %v462 = vsel %vm459, %v397, %v429
        %v463 = vsel %vm459, %v398, %v430
        %v464 = vsel %vm459, %v399, %v431
        %v465 = vsel %vm459, %v400, %v432
        %v466 = vsel %vm459, %v401, %v433
        %v467 = vsel %vm459, %v402, %v434
        %v468 = vsel %vm459, %v403, %v435
        %v469 = vsel %vm459, %v404, %v436
        %v470 = vsel %vm459, %v405, %v437
        %v471 = vsel %vm459, %v406, %v438
        %v472 = vsel %vm459, %v407, %v439
        %v473 = vsel %vm459, %v408, %v440
        %v474 = vsel %vm459, %v409, %v441
        %v475 = vsel %vm459, %v410, %v442
        %v492 = vrot.slane %v460, 4
        %v493 = vrot.slane %v461, 4
        %v494 = vrot.slane %v462, 4
        %v495 = vrot.slane %v463, 4
        %v496 = vrot.slane %v464, 4
        %v497 = vrot.slane %v465, 4
        %v498 = vrot.slane %v466, 4
        %v499 = vrot.slane %v467, 4
        %v500 = vrot.slane %v468, 4
        %v501 = vrot.slane %v469, 4
        %v502 = vrot.slane %v470, 4
        %v503 = vrot.slane %v471, 4
        %v504 = vrot.slane %v472, 4
        %v505 = vrot.slane %v473, 4
        %v506 = vrot.slane %v474, 4
        %v507 = vrot.slane %v475, 4
        %508 = vst [vmem:[#allocation1] ss:$2 sm:$0xff] %v460
        %s509 = scalar_lea.vmem [#allocation1], 1
        %510 = vst [vmem:[%s509] ss:$2 sm:$0xff] %v492
        %s511 = scalar_lea.vmem [#allocation1], 16
        %512 = vst [vmem:[%s511] ss:$2 sm:$0xff] %v395
        %s513 = scalar_lea.vmem [#allocation1], 17
        %514 = vst [vmem:[%s513] ss:$2 sm:$0xff] %v461
        %s515 = scalar_lea.vmem [#allocation1], 32
        %516 = vst [vmem:[%s515] ss:$2 sm:$0xff] %v493
        %s517 = scalar_lea.vmem [#allocation1], 33
        %518 = vst [vmem:[%s517] ss:$2 sm:$0xff] %v396
        %s519 = scalar_lea.vmem [#allocation1], 48
        %520 = vst [vmem:[%s519] ss:$2 sm:$0xff] %v462
        %s521 = scalar_lea.vmem [#allocation1], 49
        %522 = vst [vmem:[%s521] ss:$2 sm:$0xff] %v494
        %v523 = vld.sshfl [vmem:[#allocation1] sm:$0xff pattern:$0x75316420]
        %v524 = vld.sshfl [vmem:[#allocation1 + $0x10] sm:$0xff pattern:$0x75316420]
        %v525 = vld.sshfl [vmem:[#allocation1 + $0x20] sm:$0xff pattern:$0x75316420]
        %v526 = vld.sshfl [vmem:[#allocation1 + $0x30] sm:$0xff pattern:$0x75316420]
        %527 = vst [vmem:[#allocation1] ss:$2 sm:$0xff] %v397
        %528 = vst [vmem:[%s509] ss:$2 sm:$0xff] %v463
        %529 = vst [vmem:[%s511] ss:$2 sm:$0xff] %v495
        %530 = vst [vmem:[%s513] ss:$2 sm:$0xff] %v398
        %531 = vst [vmem:[%s515] ss:$2 sm:$0xff] %v464
        %532 = vst [vmem:[%s517] ss:$2 sm:$0xff] %v496
        %533 = vst [vmem:[%s519] ss:$2 sm:$0xff] %v399
        %534 = vst [vmem:[%s521] ss:$2 sm:$0xff] %v465
        %v535 = vld.sshfl [vmem:[#allocation1] sm:$0xff pattern:$0x75316420]
        %v536 = vld.sshfl [vmem:[#allocation1 + $0x10] sm:$0xff pattern:$0x75316420]
        %v537 = vld.sshfl [vmem:[#allocation1 + $0x20] sm:$0xff pattern:$0x75316420]
        %v538 = vld.sshfl [vmem:[#allocation1 + $0x30] sm:$0xff pattern:$0x75316420]
        %539 = vst [vmem:[#allocation1] ss:$2 sm:$0xff] %v497
        %540 = vst [vmem:[%s509] ss:$2 sm:$0xff] %v400
        %541 = vst [vmem:[%s511] ss:$2 sm:$0xff] %v466
        %542 = vst [vmem:[%s513] ss:$2 sm:$0xff] %v498
        %543 = vst [vmem:[%s515] ss:$2 sm:$0xff] %v401
        %544 = vst [vmem:[%s517] ss:$2 sm:$0xff] %v467
        %545 = vst [vmem:[%s519] ss:$2 sm:$0xff] %v499
        %546 = vst [vmem:[%s521] ss:$2 sm:$0xff] %v402
        %v547 = vld.sshfl [vmem:[#allocation1] sm:$0xff pattern:$0x75316420]
        %v548 = vld.sshfl [vmem:[#allocation1 + $0x10] sm:$0xff pattern:$0x75316420]
        %v549 = vld.sshfl [vmem:[#allocation1 + $0x20] sm:$0xff pattern:$0x75316420]
        %v550 = vld.sshfl [vmem:[#allocation1 + $0x30] sm:$0xff pattern:$0x75316420]
        %551 = vst [vmem:[#allocation1] ss:$2 sm:$0xff] %v468
        %552 = vst [vmem:[%s509] ss:$2 sm:$0xff] %v500
        %553 = vst [vmem:[%s511] ss:$2 sm:$0xff] %v403
        %554 = vst [vmem:[%s513] ss:$2 sm:$0xff] %v469
        %555 = vst [vmem:[%s515] ss:$2 sm:$0xff] %v501
        %556 = vst [vmem:[%s517] ss:$2 sm:$0xff] %v404
        %557 = vst [vmem:[%s519] ss:$2 sm:$0xff] %v470
        %558 = vst [vmem:[%s521] ss:$2 sm:$0xff] %v502
        %v559 = vld.sshfl [vmem:[#allocation1] sm:$0xff pattern:$0x75316420]
        %v560 = vld.sshfl [vmem:[#allocation1 + $0x10] sm:$0xff pattern:$0x75316420]
        %v561 = vld.sshfl [vmem:[#allocation1 + $0x20] sm:$0xff pattern:$0x75316420]
        %v562 = vld.sshfl [vmem:[#allocation1 + $0x30] sm:$0xff pattern:$0x75316420]
        %563 = vst [vmem:[#allocation1] ss:$2 sm:$0xff] %v405
        %564 = vst [vmem:[%s509] ss:$2 sm:$0xff] %v471
        %565 = vst [vmem:[%s511] ss:$2 sm:$0xff] %v503
        %566 = vst [vmem:[%s513] ss:$2 sm:$0xff] %v406
        %567 = vst [vmem:[%s515] ss:$2 sm:$0xff] %v472
        %568 = vst [vmem:[%s517] ss:$2 sm:$0xff] %v504
        %569 = vst [vmem:[%s519] ss:$2 sm:$0xff] %v407
        %570 = vst [vmem:[%s521] ss:$2 sm:$0xff] %v473
        %v571 = vld.sshfl [vmem:[#allocation1] sm:$0xff pattern:$0x75316420]
        %v572 = vld.sshfl [vmem:[#allocation1 + $0x10] sm:$0xff pattern:$0x75316420]
        %v573 = vld.sshfl [vmem:[#allocation1 + $0x20] sm:$0xff pattern:$0x75316420]
        %v574 = vld.sshfl [vmem:[#allocation1 + $0x30] sm:$0xff pattern:$0x75316420]
        %575 = vst [vmem:[#allocation1] ss:$2 sm:$0xff] %v505
        %576 = vst [vmem:[%s509] ss:$2 sm:$0xff] %v408
        %577 = vst [vmem:[%s511] ss:$2 sm:$0xff] %v474
        %578 = vst [vmem:[%s513] ss:$2 sm:$0xff] %v506
        %579 = vst [vmem:[%s515] ss:$2 sm:$0xff] %v409
        %580 = vst [vmem:[%s517] ss:$2 sm:$0xff] %v475
        %581 = vst [vmem:[%s519] ss:$2 sm:$0xff] %v507
        %582 = vst [vmem:[%s521] ss:$2 sm:$0xff] %v410
        %v583 = vld.sshfl [vmem:[#allocation1] sm:$0xff pattern:$0x75316420]
        %v584 = vld.sshfl [vmem:[#allocation1 + $0x10] sm:$0xff pattern:$0x75316420]
        %v585 = vld.sshfl [vmem:[#allocation1 + $0x20] sm:$0xff pattern:$0x75316420]
        %v586 = vld.sshfl [vmem:[#allocation1 + $0x30] sm:$0xff pattern:$0x75316420]
        %611 = vxpose.xlu0.b32.start [1/16] %v523, 128
        %612 = vxpose.xlu0.b32.cont [2/16] %v524, 128
        %613 = vxpose.xlu0.b32.cont [3/16] %v525, 128
        %614 = vxpose.xlu0.b32.cont [4/16] %v526, 128
        %615 = vxpose.xlu0.b32.cont [5/16] %v535, 128
        %616 = vxpose.xlu0.b32.cont [6/16] %v536, 128
        %617 = vxpose.xlu0.b32.cont [7/16] %v537, 128
        %618 = vxpose.xlu0.b32.cont [8/16] %v538, 128
        %619 = vxpose.xlu0.b32.cont [9/16] %v547, 128
        %620 = vxpose.xlu0.b32.cont [10/16] %v548, 128
        %621 = vxpose.xlu0.b32.cont [11/16] %v549, 128
        %622 = vxpose.xlu0.b32.cont [12/16] %v550, 128
        %623 = vxpose.xlu0.b32.cont [13/16] %v559, 128
        %624 = vxpose.xlu0.b32.cont [14/16] %v560, 128
        %625 = vxpose.xlu0.b32.cont [15/16] %v561, 128
        %626 = vxpose.xlu0.b32.end [16/16] %v562, 128
        %v627 = vpop.trf.xlu0
        %v628 = vpop.trf.xlu0
        %v629 = vpop.trf.xlu0
        %v630 = vpop.trf.xlu0
        %v631 = vpop.trf.xlu0
        %v632 = vpop.trf.xlu0
        %v633 = vpop.trf.xlu0
        %v634 = vpop.trf.xlu0
        %v635 = vpop.trf.xlu0
        %v636 = vpop.trf.xlu0
        %v637 = vpop.trf.xlu0
        %v638 = vpop.trf.xlu0
        %v639 = vpop.trf.xlu0
        %v640 = vpop.trf.xlu0
        %v641 = vpop.trf.xlu0
        %v642 = vpop.trf.xlu0
        %643 = vxpose.xlu0.b32.start [1/16] %v571, 128
        %644 = vxpose.xlu0.b32.cont [2/16] %v572, 128
        %645 = vxpose.xlu0.b32.cont [3/16] %v573, 128
        %646 = vxpose.xlu0.b32.cont [4/16] %v574, 128
        %647 = vxpose.xlu0.b32.cont [5/16] %v583, 128
        %648 = vxpose.xlu0.b32.cont [6/16] %v584, 128
        %649 = vxpose.xlu0.b32.cont [7/16] %v585, 128
        %650 = vxpose.xlu0.b32.cont [8/16] %v586, 128
        %651 = vxpose.xlu0.b32.cont [9/16] 0.0, 128
        %652 = vxpose.xlu0.b32.cont [10/16] 0.0, 128
        %653 = vxpose.xlu0.b32.cont [11/16] 0.0, 128
        %654 = vxpose.xlu0.b32.cont [12/16] 0.0, 128
        %655 = vxpose.xlu0.b32.cont [13/16] 0.0, 128
        %656 = vxpose.xlu0.b32.cont [14/16] 0.0, 128
        %657 = vxpose.xlu0.b32.cont [15/16] 0.0, 128
        %658 = vxpose.xlu0.b32.end [16/16] 0.0, 128
        %v659 = vpop.trf.xlu0
        %v660 = vpop.trf.xlu0
        %v661 = vpop.trf.xlu0
        %v662 = vpop.trf.xlu0
        %v663 = vpop.trf.xlu0
        %v664 = vpop.trf.xlu0
        %v665 = vpop.trf.xlu0
        %v666 = vpop.trf.xlu0
        %v667 = vpop.trf.xlu0
        %v668 = vpop.trf.xlu0
        %v669 = vpop.trf.xlu0
        %v670 = vpop.trf.xlu0
        %v671 = vpop.trf.xlu0
        %v672 = vpop.trf.xlu0
        %v673 = vpop.trf.xlu0
        %v674 = vpop.trf.xlu0
        %675 = vst [vmem:[%s166] sm:$0xff] %v627
        %vm676 = vcmask 523264
        %677 = vst.msk [vmem:[%s166 + $0x8] sm:$0xff] %vm676, %v659
        %678 = vst [vmem:[%s166 + $0x10] sm:$0xff] %v628
        %679 = vst.msk [vmem:[%s166 + $0x18] sm:$0xff] %vm676, %v660
        %s680 = sand.u32 %s79, 1
        %s681 = scalar_lea.sflag [#allocation4], %s680
        %s682 = sand.u32 %s79, 1
        %s683 = smul.addr %s682, 32
        %s684 = scalar_lea.vmem [#allocation5], %s683
        // Predicated region
        $region29: #{tpu_custom_call.1} parent=23 // pred_check
          %p685 = pneg %p89
        $region30: #{tpu_custom_call.1} parent=23 // pred_check_branch
          %687 = sbr.rel (%p685) target = $region32
        $region31: #{tpu_custom_call.1} parent=23 // pred_region
          %s688 = smul.u32 2, %s25
          %s689 = smul.u32 2, %s24
          %691 = vsyncadd %s681, 0
          %s692 = smul.addr %s688, 2
          %s693 = sadd.s32 %s689, %s692
          %s694 = smul.addr %s23, 4
          %s695 = sadd.s32 %s693, %s694
          %s696 = smul.addr %s695, 8
          %s697 = scalar_lea.hbm %s1, %s696
          %s698 = sshll.u32 %s684, 4
          %s699 = int_to_ptr.vmem [resolvable:$true] %s698
          %s700 = sshll.u32 %s697, 4
          %s701 = int_to_ptr.hbm [resolvable:$true] %s700
          %706 = dma.vmem_to_hbm [thread:$0]  %s699, 512, %s701, %s681, 256, 256, 16
        $region32: #{tpu_custom_call.1} parent=23 // pred_fallthru
          _
      $region24: #{tpu_custom_call.1} parent=5 // pred_fallthru
        _
      %p707 = scmp.le.s32.totalorder 2, %s13
      // Predicated region
      $region33: #{tpu_custom_call.1} parent=5 // pred_check
        %p708 = pneg %p707
      $region34: #{tpu_custom_call.1} parent=5 // pred_check_branch
        %710 = sbr.rel (%p708) target = $region36
      $region35: #{tpu_custom_call.1} parent=5 // pred_region
        %s711 = ssub.s32 %s13, 2
        // Predicated region
        $region37: #{tpu_custom_call.1} parent=35 // pred_check
          %p712 = pneg %p95
        $region38: #{tpu_custom_call.1} parent=35 // pred_check_branch
          %714 = sbr.rel (%p712) target = $region40
        $region39: #{tpu_custom_call.1} parent=35 // pred_region
          %s715 = sand.u32 %s80, 1
          %s716 = scalar_lea.sflag [#allocation4], %s715
          %s717 = sand.u32 %s80, 1
          %s718 = smul.addr %s717, 32
          %s719 = scalar_lea.vmem [#allocation5], %s718
          %721 = dma.done %s716, 512
        $region40: #{tpu_custom_call.1} parent=35 // pred_fallthru
          _
      $region36: #{tpu_custom_call.1} parent=5 // pred_fallthru
        _
    $region6: #{tpu_custom_call.1} parent=1 // loop_footer
      %s17 = sadd.s32 1, %s13
    $region7: #{tpu_custom_call.1} parent=1 // loop_footer_branch
      %12 = sbr.rel target = $region3
    $region8: #{tpu_custom_call.1} parent=1 // loop_exit
      _
    %722 = vsyncpa [#allocation3], 1
    %s723 = scalar_lea.sflag [#allocation3], 1
    %724 = vsyncpa %s723, 1
    %725 = vsyncpa [#allocation4], 1
    %s726 = scalar_lea.sflag [#allocation4], 1
    %727 = vsyncpa %s726, 1

</llo_original>
